<compile_context>
chip_gen: v6e
topology: v6e:2x2x1
jax: 0.10.0
libtpu: 0.0.40
codegen_flags: <defaults>
</compile_context>

<pallas_src>
import jax
import jax.numpy as jnp
from jax.experimental import pallas as pl
from jax.experimental.pallas import tpu as pltpu


def time_embedding_kernel(x_ref, w1_ref, b1_ref, w2_ref, b2_ref, o_ref):
    compute_dtype = w1_ref.dtype
    x = x_ref[...].astype(compute_dtype)                       # (TB, E), usually a no-op

    # linear_1: (TB, E) @ (E, H) -> (TB, H); MXU with f32 accumulation.
    h = jnp.dot(x, w1_ref[...], preferred_element_type=jnp.float32)
    h = h + b1_ref[...]                                        # bias in f32

    # SiLU in f32: sigmoid via exp (EUP) + approx reciprocal (EUP vrcp slot).
    e = jnp.exp(-h)
    s = pl.reciprocal(1.0 + e, approx=True)
    h = h * s

    # linear_2: (TB, H) @ (H, H) -> (TB, H); feed MXU in compute dtype.
    h = h.astype(compute_dtype)
    o = jnp.dot(h, w2_ref[...], preferred_element_type=jnp.float32)
    o = o + b2_ref[...]
    o_ref[...] = o.astype(o_ref.dtype)


def prepare_time_embedding_params(w1, b1, w2, b2, compute_dtype=jnp.bfloat16):
    """One-time parameter prep (do this at load time, not per call).

    Converts PyTorch (out, in) weights to K-major layout and the MXU compute
    dtype; biases to f32 row vectors.
    """
    w1t = jnp.asarray(w1).T.astype(compute_dtype)              # (E, H)
    w2t = jnp.asarray(w2).T.astype(compute_dtype)              # (H, H), K-major
    H = w1t.shape[1]
    b1_2d = jnp.asarray(b1).reshape(1, H).astype(jnp.float32)
    b2_2d = jnp.asarray(b2).reshape(1, H).astype(jnp.float32)
    return w1t, b1_2d, w2t, b2_2d


def _pick_tile_b(B):
    # Biggest tile that divides B, but at large B keep exactly 2 grid steps so
    # the "parallel" batch axis can be split across v7x's two TensorCores.
    # Sublane-dim tiles must be a multiple of 8 unless they cover all of B.
    if B >= 256 and B % 2 == 0 and (B // 2) % 8 == 0:
        return B // 2
    return B


def time_embedding(x, w1t, b1_2d, w2t, b2_2d, *, out_dtype=None):
    """Forward pass of TimeEmbedding with pre-prepared params.

    Args:
      x:     (B, E) timestep embedding input (any float dtype)
      w1t:   (E, H) K-major weight of linear_1 (from prepare_time_embedding_params)
      b1_2d: (1, H) f32 bias of linear_1
      w2t:   (H, H) K-major weight of linear_2
      b2_2d: (1, H) f32 bias of linear_2
      out_dtype: output dtype (default: x.dtype; pass jnp.bfloat16 to halve
                 writeback traffic if the consumer tolerates it)
    Returns:
      (B, H) in out_dtype
    """
    B, E = x.shape
    H = w1t.shape[1]
    compute_dtype = w1t.dtype
    out_dtype = x.dtype if out_dtype is None else out_dtype

    tile_b = _pick_tile_b(B)
    nb = B // tile_b

    # Cast x once in the wrapper (no-op if the pipeline already keeps x in bf16).
    xc = x.astype(compute_dtype)

    return pl.pallas_call(
        time_embedding_kernel,
        out_shape=jax.ShapeDtypeStruct((B, H), out_dtype),
        grid=(nb,),
        in_specs=[
            pl.BlockSpec((tile_b, E), lambda i: (i, 0)),   # x: tiled over batch
            pl.BlockSpec((E, H), lambda i: (0, 0)),        # w1t: resident in VMEM
            pl.BlockSpec((1, H), lambda i: (0, 0)),        # b1: resident
            pl.BlockSpec((H, H), lambda i: (0, 0)),        # w2t: resident
            pl.BlockSpec((1, H), lambda i: (0, 0)),        # b2: resident
        ],
        out_specs=pl.BlockSpec((tile_b, H), lambda i: (i, 0)),
        compiler_params=pltpu.CompilerParams(
            dimension_semantics=("parallel",)),            # megacore split on v7x
    )(xc, w1t, b1_2d, w2t, b2_2d)


def reference(x, w1, b1, w2, b2):
    h = x @ w1.T + b1
    h = h * jax.nn.sigmoid(h)
    return h @ w2.T + b2


if __name__ == "__main__":
    # Small shapes consistent with the module: embed_size=32, fwd_exp=4 -> H=128.
    B, E, FWD = 2, 32, 4
    H = FWD * E

    key = jax.random.PRNGKey(0)
    kx, kw1, kb1, kw2, kb2, kx2 = jax.random.split(key, 6)

    # Deterministic parameter init mimicking nn.Linear (uniform in +-1/sqrt(fan_in)).
    x = jax.random.normal(kx, (B, E), dtype=jnp.float32)
    bound1 = 1.0 / (E ** 0.5)
    w1 = jax.random.uniform(kw1, (H, E), jnp.float32, -bound1, bound1)
    b1 = jax.random.uniform(kb1, (H,), jnp.float32, -bound1, bound1)
    bound2 = 1.0 / (H ** 0.5)
    w2 = jax.random.uniform(kw2, (H, H), jnp.float32, -bound2, bound2)
    b2 = jax.random.uniform(kb2, (H,), jnp.float32, -bound2, bound2)

    ref = reference(x, w1, b1, w2, b2)

    # One-time parameter prep (K-major, bf16 MXU dtype).
    params = prepare_time_embedding_params(w1, b1, w2, b2)

    # 1) Default path (bf16 MXU, f32 accumulation/bias/SiLU, f32 output).
    out = jax.block_until_ready(time_embedding(x, *params))
    assert out.shape == (B, H), out.shape
    assert out.dtype == x.dtype, out.dtype
    assert jnp.allclose(out, ref, atol=3e-2, rtol=3e-2), "bf16 path mismatch"

    # 2) bf16-output path (halved writeback traffic).
    out_bf16 = jax.block_until_ready(
        time_embedding(x, *params, out_dtype=jnp.bfloat16))
    assert out_bf16.dtype == jnp.bfloat16
    assert jnp.allclose(out_bf16.astype(jnp.float32), ref, atol=5e-2, rtol=5e-2), \
        "bf16 output mismatch"

    # 3) Larger batch exercises the grid: B=512 -> tile_b=256, nb=2 (one step
    #    per TensorCore on v7x, weights resident across steps).
    B2 = 512
    x2 = jax.random.normal(kx2, (B2, E), dtype=jnp.float32)
    out_big = jax.block_until_ready(time_embedding(x2, *params))
    ref_big = reference(x2, w1, b1, w2, b2)
    assert out_big.shape == (B2, H), out_big.shape
    assert jnp.allclose(out_big, ref_big, atol=3e-2, rtol=3e-2), "grid mismatch"

    print("KERNEL_OK")
</pallas_src>

<mosaic_0001>
module attributes {stable_mosaic.version = 11 : i64} {
  func.func @time_embedding_kernel(%arg0: i32, %arg1: memref<2x32xbf16, #tpu.memory_space<vmem>>, %arg2: memref<32x128xbf16, #tpu.memory_space<vmem>>, %arg3: memref<1x128xf32, #tpu.memory_space<vmem>>, %arg4: memref<128x128xbf16, #tpu.memory_space<vmem>>, %arg5: memref<1x128xf32, #tpu.memory_space<vmem>>, %arg6: memref<2x128xf32, #tpu.memory_space<vmem>>) attributes {dimension_semantics = [#tpu.dimension_semantics<parallel>], iteration_bounds = array<i64: 1>, scalar_prefetch = 0 : i64, scratch_operands = 0 : i64, tpu.core_type = #tpu.core_type<tc>, window_params = [{transform_indices = @transform_0, window_bounds = array<i64: 2, 32>}, {pipeline_mode = #tpu.pipeline_mode<synchronous>, transform_indices = @transform_1, window_bounds = array<i64: 32, 128>}, {pipeline_mode = #tpu.pipeline_mode<synchronous>, transform_indices = @transform_2, window_bounds = array<i64: 1, 128>}, {pipeline_mode = #tpu.pipeline_mode<synchronous>, transform_indices = @transform_3, window_bounds = array<i64: 128, 128>}, {pipeline_mode = #tpu.pipeline_mode<synchronous>, transform_indices = @transform_4, window_bounds = array<i64: 1, 128>}, {transform_indices = @transform_5, window_bounds = array<i64: 2, 128>}]} {
    %c0 = arith.constant 0 : index
    %c0_0 = arith.constant 0 : index
    %0 = vector.load %arg1[%c0, %c0_0] : memref<2x32xbf16, #tpu.memory_space<vmem>>, vector<2x32xbf16>
    %c0_1 = arith.constant 0 : index
    %c0_2 = arith.constant 0 : index
    %1 = vector.load %arg2[%c0_1, %c0_2] : memref<32x128xbf16, #tpu.memory_space<vmem>>, vector<32x128xbf16>
    %cst = arith.constant dense<0.000000e+00> : vector<2x128xf32>
    %2 = tpu.matmul %0, %1, %cst {dimension_numbers = #tpu.dot_dimension_numbers<[1], [0], [0], [1], [0, 0, 1, 1], [], []>} : vector<2x32xbf16>, vector<32x128xbf16>, vector<2x128xf32> -> vector<2x128xf32>
    %c0_3 = arith.constant 0 : index
    %c0_4 = arith.constant 0 : index
    %3 = vector.load %arg3[%c0_3, %c0_4] : memref<1x128xf32, #tpu.memory_space<vmem>>, vector<1x128xf32>
    %4 = vector.broadcast %3 : vector<1x128xf32> to vector<2x128xf32>
    %5 = arith.addf %2, %4 : vector<2x128xf32>
    %cst_5 = arith.constant 0.000000e+00 : f32
    %6 = vector.broadcast %cst_5 : f32 to vector<2x128xf32>
    %7 = arith.subf %6, %5 : vector<2x128xf32>
    %8 = math.exp %7 : vector<2x128xf32>
    %cst_6 = arith.constant 1.000000e+00 : f32
    %9 = vector.broadcast %cst_6 : f32 to vector<2x128xf32>
    %10 = arith.addf %9, %8 : vector<2x128xf32>
    %11 = tpu.reciprocal %10 {approx = true} : vector<2x128xf32> -> vector<2x128xf32>
    %12 = arith.mulf %5, %11 : vector<2x128xf32>
    %13 = arith.truncf %12 : vector<2x128xf32> to vector<2x128xbf16>
    %c0_7 = arith.constant 0 : index
    %c0_8 = arith.constant 0 : index
    %14 = vector.load %arg4[%c0_7, %c0_8] : memref<128x128xbf16, #tpu.memory_space<vmem>>, vector<128x128xbf16>
    %cst_9 = arith.constant dense<0.000000e+00> : vector<2x128xf32>
    %15 = tpu.matmul %13, %14, %cst_9 {dimension_numbers = #tpu.dot_dimension_numbers<[1], [0], [0], [1], [0, 0, 1, 1], [], []>} : vector<2x128xbf16>, vector<128x128xbf16>, vector<2x128xf32> -> vector<2x128xf32>
    %c0_10 = arith.constant 0 : index
    %c0_11 = arith.constant 0 : index
    %16 = vector.load %arg5[%c0_10, %c0_11] : memref<1x128xf32, #tpu.memory_space<vmem>>, vector<1x128xf32>
    %17 = vector.broadcast %16 : vector<1x128xf32> to vector<2x128xf32>
    %18 = arith.addf %15, %17 : vector<2x128xf32>
    %c0_12 = arith.constant 0 : index
    %c0_13 = arith.constant 0 : index
    %19 = vector.load %arg6[%c0_12, %c0_13] : memref<2x128xf32, #tpu.memory_space<vmem>>, vector<2x128xf32>
    tpu.vector_store %arg6[%c0_12, %c0_13], %18 {strides = array<i32>} : memref<2x128xf32, #tpu.memory_space<vmem>>, vector<2x128xf32>,
    return
  }
  func.func @transform_0(%arg0: i32) -> (i32, i32) {
    %c0_i32 = arith.constant 0 : i32
    %c0_i32_0 = arith.constant 0 : i32
    return %arg0, %c0_i32 : i32, i32
  }
  func.func @transform_1(%arg0: i32) -> (i32, i32) {
    %c0_i32 = arith.constant 0 : i32
    %c0_i32_0 = arith.constant 0 : i32
    %c0_i32_1 = arith.constant 0 : i32
    return %c0_i32, %c0_i32_0 : i32, i32
  }
  func.func @transform_2(%arg0: i32) -> (i32, i32) {
    %c0_i32 = arith.constant 0 : i32
    %c0_i32_0 = arith.constant 0 : i32
    %c0_i32_1 = arith.constant 0 : i32
    return %c0_i32, %c0_i32_0 : i32, i32
  }
  func.func @transform_3(%arg0: i32) -> (i32, i32) {
    %c0_i32 = arith.constant 0 : i32
    %c0_i32_0 = arith.constant 0 : i32
    %c0_i32_1 = arith.constant 0 : i32
    return %c0_i32, %c0_i32_0 : i32, i32
  }
  func.func @transform_4(%arg0: i32) -> (i32, i32) {
    %c0_i32 = arith.constant 0 : i32
    %c0_i32_0 = arith.constant 0 : i32
    %c0_i32_1 = arith.constant 0 : i32
    return %c0_i32, %c0_i32_0 : i32, i32
  }
  func.func @transform_5(%arg0: i32) -> (i32, i32) {
    %c0_i32 = arith.constant 0 : i32
    %c0_i32_0 = arith.constant 0 : i32
    return %arg0, %c0_i32 : i32, i32
  }
}

</mosaic_0001>

<llo_original>
// kernel: tpu_custom_call.1
$region0: #{tpu_custom_call.1}
  #allocation0 [shape = 'u32[]', space=smem, size = 0x4, offset = 0x4, fixed_abs, tag = 'smem constant byte address 0x4 - core index']
  #allocation1 [shape = 'u32[144,128]{1,0:T(1,128)}', space=vmem, size = 0x12000, scoped, tag = 'internal scratch']
  %s0 = inlined_call_operand.hbm [shape: bf16[2,32], index: 0, kind: input, shape index: {}]
  %s1 = inlined_call_operand.hbm [shape: bf16[32,128], index: 1, kind: input, shape index: {}]
  %s2 = inlined_call_operand.vmem [shape: f32[1,128], index: 2, kind: input, shape index: {}]
  %s3 = inlined_call_operand.hbm [shape: bf16[128,128], index: 3, kind: input, shape index: {}]
  %s4 = inlined_call_operand.vmem [shape: f32[1,128], index: 4, kind: input, shape index: {}]
  %s5 = inlined_call_operand.hbm [shape: f32[2,128], index: 5, kind: output, shape index: {}]
  %s6 = sld [smem:[#allocation0]]
  $region42: #{tpu_custom_call.1} parent=0
    _
  %s8 = ssub.s32 1, %s6
  %s9 = scalar_select 0, %s8, %s6
  $region1: #{tpu_custom_call.1} parent=0
    #allocation2 [shape = 'u8[512]{0}', space=vmem, size = 0x400, scoped, tag = 'input window, operand 0, single buffered']
    #allocation3 [shape = 's32[1]{0}', space=sflag, size = 0x4, scoped, tag = 'scoped memory for tpu_custom_call.1']
    #allocation4 [shape = 's32[1]{0}', space=sflag, size = 0x4, scoped, tag = 'scoped memory for tpu_custom_call.1']
    #allocation5 [shape = 'u8[8192]{0}', space=vmem, size = 0x2000, scoped, tag = 'input window, operand 1, single buffered']
    #allocation6 [shape = 's32[1]{0}', space=sflag, size = 0x4, scoped, tag = 'scoped memory for tpu_custom_call.1']
    #allocation7 [shape = 'u8[32768]{0}', space=vmem, size = 0x8000, scoped, tag = 'input window, operand 3, single buffered']
    #allocation8 [shape = 'u8[1024]{0}', space=vmem, size = 0x400, scoped, tag = 'output window, operand 0, single buffered']
    %10 = vsyncpa [#allocation3], 0
    %11 = vsyncpa [#allocation6], 0
    %12 = vsyncpa [#allocation4], 0
    // Predicated region
    $region2: #{tpu_custom_call.1} parent=1 // pred_check
      _
    $region3: #{tpu_custom_call.1} parent=1 // pred_check_branch
      %14 = sbr.rel (0) target = $region5
    $region4: #{tpu_custom_call.1} parent=1 // pred_region
      %s16 = ssub.s32 16, 16
      %17 = vsyncadd [#allocation3], %s16
      %s19 = sshll.u32 [#allocation2], 4
      %s20 = int_to_ptr.vmem [resolvable:$true] %s19
      %22 = dma.hbm_to_vmem [thread:$0]  %s0, 16, %s20, [#allocation3]
    $region5: #{tpu_custom_call.1} parent=1 // pred_fallthru
      _
    // Predicated region
    $region6: #{tpu_custom_call.1} parent=1 // pred_check
      _
    $region7: #{tpu_custom_call.1} parent=1 // pred_check_branch
      %24 = sbr.rel (0) target = $region9
    $region8: #{tpu_custom_call.1} parent=1 // pred_region
      %s26 = ssub.s32 256, 256
      %27 = vsyncadd [#allocation6], %s26
      %s28 = sshll.u32 [#allocation5], 4
      %s29 = int_to_ptr.vmem [resolvable:$true] %s28
      %34 = dma.hbm_to_vmem [thread:$0]  %s1, 256, %s29, [#allocation6], 64, 64, 4
    $region9: #{tpu_custom_call.1} parent=1 // pred_fallthru
      _
    // Predicated region
    $region10: #{tpu_custom_call.1} parent=1 // pred_check
      _
    $region11: #{tpu_custom_call.1} parent=1 // pred_check_branch
      %36 = sbr.rel (0) target = $region13
    $region12: #{tpu_custom_call.1} parent=1 // pred_region
      _
    $region13: #{tpu_custom_call.1} parent=1 // pred_fallthru
      _
    // Predicated region
    $region14: #{tpu_custom_call.1} parent=1 // pred_check
      _
    $region15: #{tpu_custom_call.1} parent=1 // pred_check_branch
      %38 = sbr.rel (0) target = $region17
    $region16: #{tpu_custom_call.1} parent=1 // pred_region
      %s40 = ssub.s32 1024, 1024
      %41 = vsyncadd [#allocation6], %s40
      %s42 = sshll.u32 [#allocation7], 4
      %s43 = int_to_ptr.vmem [resolvable:$true] %s42
      %48 = dma.hbm_to_vmem [thread:$0]  %s3, 1024, %s43, [#allocation6], 64, 64, 4
    $region17: #{tpu_custom_call.1} parent=1 // pred_fallthru
      _
    // Predicated region
    $region18: #{tpu_custom_call.1} parent=1 // pred_check
      _
    $region19: #{tpu_custom_call.1} parent=1 // pred_check_branch
      %50 = sbr.rel (0) target = $region21
    $region20: #{tpu_custom_call.1} parent=1 // pred_region
      _
    $region21: #{tpu_custom_call.1} parent=1 // pred_fallthru
      _
    // Predicated region
    $region22: #{tpu_custom_call.1} parent=1 // pred_check
      _
    $region23: #{tpu_custom_call.1} parent=1 // pred_check_branch
      %52 = sbr.rel (0) target = $region25
    $region24: #{tpu_custom_call.1} parent=1 // pred_region
      %53 = dma.done [#allocation3], 16
    $region25: #{tpu_custom_call.1} parent=1 // pred_fallthru
      _
    // Predicated region
    $region26: #{tpu_custom_call.1} parent=1 // pred_check
      _
    $region27: #{tpu_custom_call.1} parent=1 // pred_check_branch
      %55 = sbr.rel (0) target = $region29
    $region28: #{tpu_custom_call.1} parent=1 // pred_region
      %56 = dma.done [#allocation6], 256
    $region29: #{tpu_custom_call.1} parent=1 // pred_fallthru
      _
    // Predicated region
    $region30: #{tpu_custom_call.1} parent=1 // pred_check
      _
    $region31: #{tpu_custom_call.1} parent=1 // pred_check_branch
      %58 = sbr.rel (0) target = $region33
    $region32: #{tpu_custom_call.1} parent=1 // pred_region
      %59 = dma.done [#allocation6], 1024
    $region33: #{tpu_custom_call.1} parent=1 // pred_fallthru
      _
    %v61 = vld [vmem:[#allocation2] sm:$0x1]
    %v62 = vld [vmem:[#allocation5] sm:$0xf]
    %v63 = vld [vmem:[#allocation5 + $0x4] sm:$0xf]
    %v64 = vld [vmem:[#allocation5 + $0x8] sm:$0xf]
    %v65 = vld [vmem:[#allocation5 + $0xc] sm:$0xf]
    %v66 = vld [vmem:[%s2] sm:$0x1]
    %v68 = vlaneseq
    %v69 = vshrl.u32 %v68, 7
    %v70 = vsub.s32 0, %v69
    %v71 = vrot.slane %v66, %v70
    %v77 = vunpack.c.l.b16 %v62
    %v78 = vunpack.c.l.b16 %v63
    %v79 = vunpack.c.l.b16 %v64
    %v80 = vunpack.c.l.b16 %v65
    %v81 = vpack.c.b16 %v78, %v77
    %v82 = vpack.c.b16 %v80, %v79
    %vm85 = vcmask 261120
    %v87 = vsel %vm85, %v61, 0
    %89 = vmatprep.subr.bf16.mxu0 0
    %90 = vmatpush1.bf16.msra.mxu0 0
    %91 = vmatprep.subr.bf16.mxu0 0
    %92 = vmatpush1.bf16.msra.mxu0 0
    %93 = vmatprep.subr.bf16.mxu0 0
    %94 = vmatpush1.bf16.msra.mxu0 0
    %95 = vmatprep.subr.bf16.mxu0 0
    %96 = vmatpush1.bf16.msra.mxu0 0
    %97 = vmatprep.subr.bf16.mxu0 0
    %98 = vmatpush1.bf16.msra.mxu0 0
    %99 = vmatprep.subr.bf16.mxu0 0
    %100 = vmatpush1.bf16.msra.mxu0 0
    %101 = vmatprep.subr.bf16.mxu0 0
    %102 = vmatpush1.bf16.msra.mxu0 %v82
    %103 = vmatprep.subr.bf16.mxu0 0
    %104 = vmatpush1.bf16.msra.mxu0 %v81
    %105 = vmatprep.subr.bf16.mxu0 0
    %106 = vmatpush2.bf16.msra.mxu0 0
    %107 = vmatprep.subr.bf16.mxu0 0
    %108 = vmatpush2.bf16.msra.mxu0 0
    %109 = vmatprep.subr.bf16.mxu0 0
    %110 = vmatpush2.bf16.msra.mxu0 0
    %111 = vmatprep.subr.bf16.mxu0 0
    %112 = vmatpush2.bf16.msra.mxu0 0
    %113 = vmatprep.subr.bf16.mxu0 0
    %114 = vmatpush2.bf16.msra.mxu0 0
    %115 = vmatprep.subr.bf16.mxu0 0
    %116 = vmatpush2.bf16.msra.mxu0 0
    %117 = vmatprep.subr.bf16.mxu0 0
    %118 = vmatpush2.bf16.msra.mxu0 0
    %119 = vmatprep.subr.bf16.mxu0 0
    %120 = vmatpush2.bf16.msra.mxu0 0
    %121 = vmatprep.mubr.bf16.mxu0 0
    %122 = vmatmul.mubr.bf16.gmra.mxu0 %v87
    %v123 = vpop.f32.mrf.mxu0
    %v124 = vadd.f32 %v71, %v123
    %v125 = vpop.f32.mrf.mxu0
    %v126 = vpop.f32.mrf.mxu0
    %v127 = vpop.f32.mrf.mxu0
    %128 = vdwg.mxu0
    %v129 = vsub.f32 0.0, %v124
    %v130 = vmul.f32 %v129, 1.442695
    %v131 = vpow.pop %v130
    %v132 = vadd.f32 %v131, 1.0
    %v133 = vrcp.pop %v132
    %v134 = vmul.f32 %v124, %v133
    %v135 = vpack.c.bf16 %v134, %v134
    %v136 = vld [vmem:[#allocation7] sm:$0xf]
    %v137 = vld [vmem:[#allocation7 + $0x4] sm:$0xf]
    %v138 = vld [vmem:[#allocation7 + $0x8] sm:$0xf]
    %v139 = vld [vmem:[#allocation7 + $0xc] sm:$0xf]
    %v140 = vld [vmem:[#allocation7 + $0x10] sm:$0xf]
    %v141 = vld [vmem:[#allocation7 + $0x14] sm:$0xf]
    %v142 = vld [vmem:[#allocation7 + $0x18] sm:$0xf]
    %v143 = vld [vmem:[#allocation7 + $0x1c] sm:$0xf]
    %v144 = vld [vmem:[#allocation7 + $0x20] sm:$0xf]
    %v145 = vld [vmem:[#allocation7 + $0x24] sm:$0xf]
    %v146 = vld [vmem:[#allocation7 + $0x28] sm:$0xf]
    %v147 = vld [vmem:[#allocation7 + $0x2c] sm:$0xf]
    %v148 = vld [vmem:[#allocation7 + $0x30] sm:$0xf]
    %v149 = vld [vmem:[#allocation7 + $0x34] sm:$0xf]
    %v150 = vld [vmem:[#allocation7 + $0x38] sm:$0xf]
    %v151 = vld [vmem:[#allocation7 + $0x3c] sm:$0xf]
    %v152 = vld [vmem:[%s4] sm:$0x1]
    %v154 = vlaneseq
    %v155 = vshrl.u32 %v154, 7
    %v156 = vsub.s32 0, %v155
    %v157 = vrot.slane %v152, %v156
    %v175 = vunpack.c.l.b16 %v136
    %v176 = vunpack.c.l.b16 %v137
    %v177 = vunpack.c.l.b16 %v138
    %v178 = vunpack.c.l.b16 %v139
    %v179 = vunpack.c.l.b16 %v140
    %v180 = vunpack.c.l.b16 %v141
    %v181 = vunpack.c.l.b16 %v142
    %v182 = vunpack.c.l.b16 %v143
    %v183 = vunpack.c.l.b16 %v144
    %v184 = vunpack.c.l.b16 %v145
    %v185 = vunpack.c.l.b16 %v146
    %v186 = vunpack.c.l.b16 %v147
    %v187 = vunpack.c.l.b16 %v148
    %v188 = vunpack.c.l.b16 %v149
    %v189 = vunpack.c.l.b16 %v150
    %v190 = vunpack.c.l.b16 %v151
    %v191 = vpack.c.b16 %v176, %v175
    %v192 = vpack.c.b16 %v178, %v177
    %v193 = vpack.c.b16 %v180, %v179
    %v194 = vpack.c.b16 %v182, %v181
    %v195 = vpack.c.b16 %v184, %v183
    %v196 = vpack.c.b16 %v186, %v185
    %v197 = vpack.c.b16 %v188, %v187
    %v198 = vpack.c.b16 %v190, %v189
    %207 = vmatprep.subr.bf16.mxu0 0
    %208 = vmatpush1.bf16.msra.mxu0 %v198
    %209 = vmatprep.subr.bf16.mxu0 0
    %210 = vmatpush1.bf16.msra.mxu0 %v197
    %211 = vmatprep.subr.bf16.mxu0 0
    %212 = vmatpush1.bf16.msra.mxu0 %v196
    %213 = vmatprep.subr.bf16.mxu0 0
    %214 = vmatpush1.bf16.msra.mxu0 %v195
    %215 = vmatprep.subr.bf16.mxu0 0
    %216 = vmatpush1.bf16.msra.mxu0 %v194
    %217 = vmatprep.subr.bf16.mxu0 0
    %218 = vmatpush1.bf16.msra.mxu0 %v193
    %219 = vmatprep.subr.bf16.mxu0 0
    %220 = vmatpush1.bf16.msra.mxu0 %v192
    %221 = vmatprep.subr.bf16.mxu0 0
    %222 = vmatpush1.bf16.msra.mxu0 %v191
    %223 = vmatprep.subr.bf16.mxu0 0
    %224 = vmatpush2.bf16.msra.mxu0 0
    %225 = vmatprep.subr.bf16.mxu0 0
    %226 = vmatpush2.bf16.msra.mxu0 0
    %227 = vmatprep.subr.bf16.mxu0 0
    %228 = vmatpush2.bf16.msra.mxu0 0
    %229 = vmatprep.subr.bf16.mxu0 0
    %230 = vmatpush2.bf16.msra.mxu0 0
    %231 = vmatprep.subr.bf16.mxu0 0
    %232 = vmatpush2.bf16.msra.mxu0 0
    %233 = vmatprep.subr.bf16.mxu0 0
    %234 = vmatpush2.bf16.msra.mxu0 0
    %235 = vmatprep.subr.bf16.mxu0 0
    %236 = vmatpush2.bf16.msra.mxu0 0
    %237 = vmatprep.subr.bf16.mxu0 0
    %238 = vmatpush2.bf16.msra.mxu0 0
    %239 = vmatprep.mubr.bf16.mxu0 0
    %240 = vmatmul.mubr.bf16.gmra.mxu0 %v135
    %v241 = vpop.f32.mrf.mxu0
    %v242 = vadd.f32 %v157, %v241
    %v243 = vpop.f32.mrf.mxu0
    %v244 = vpop.f32.mrf.mxu0
    %v245 = vpop.f32.mrf.mxu0
    %246 = vdwg.mxu0
    %247 = vst [vmem:[#allocation8] sm:$0x3] %v242
    // Predicated region
    $region34: #{tpu_custom_call.1} parent=1 // pred_check
      _
    $region35: #{tpu_custom_call.1} parent=1 // pred_check_branch
      %249 = sbr.rel (0) target = $region37
    $region36: #{tpu_custom_call.1} parent=1 // pred_region
      %s251 = ssub.s32 32, 32
      %252 = vsyncadd [#allocation4], %s251
      %s254 = sshll.u32 [#allocation8], 4
      %s255 = int_to_ptr.vmem [resolvable:$true] %s254
      %257 = dma.vmem_to_hbm [thread:$0]  %s255, 32, %s5, [#allocation4]
    $region37: #{tpu_custom_call.1} parent=1 // pred_fallthru
      _
    // Predicated region
    $region38: #{tpu_custom_call.1} parent=1 // pred_check
      _
    $region39: #{tpu_custom_call.1} parent=1 // pred_check_branch
      %259 = sbr.rel (0) target = $region41
    $region40: #{tpu_custom_call.1} parent=1 // pred_region
      %260 = dma.done [#allocation4], 32
    $region41: #{tpu_custom_call.1} parent=1 // pred_fallthru
      _
    %261 = vsyncpa [#allocation3], 1
    %262 = vsyncpa [#allocation6], 1
    %263 = vsyncpa [#allocation4], 1

</llo_original>
